<compile_context>
chip_gen: v6e
topology: v6e:2x2x1
jax: 0.10.0
libtpu: 0.0.40
codegen_flags: <defaults>
</compile_context>

<pallas_src>
import math
import functools

import jax
import jax.numpy as jnp
from jax import lax
from jax.experimental import pallas as pl
from jax.experimental.pallas import tpu as pltpu


def _layer_norm(h, gamma_2d, beta_2d, eps):
    # h: (N, D); gamma_2d/beta_2d: (1, D). Biased variance, eps inside rsqrt
    # (matches torch.nn.LayerNorm defaults).
    mean = jnp.mean(h, axis=-1, keepdims=True)
    c = h - mean
    var = jnp.mean(c * c, axis=-1, keepdims=True)
    return c * lax.rsqrt(var + eps) * gamma_2d + beta_2d


def _actor_transformer_kernel(x_ref, wq_ref, wk_ref, wv_ref,
                              g1_ref, bta1_ref,
                              w1_ref, bb1_ref, w2_ref, bb2_ref,
                              g2_ref, bta2_ref,
                              o_ref, *, inv_sqrt_d, eps):
    # x_ref: (1, N, D); weight refs: (D, D) already transposed (y = x @ W_t);
    # gamma/beta/bias refs: (1, D); o_ref: (1, N, D)
    x = x_ref[0]  # (N, D)

    # --- QKV projections (MXU) ---
    q = jnp.dot(x, wq_ref[...], preferred_element_type=jnp.float32)
    k = jnp.dot(x, wk_ref[...], preferred_element_type=jnp.float32)
    v = jnp.dot(x, wv_ref[...], preferred_element_type=jnp.float32)

    # --- scaled dot-product attention ---
    # s[n, m] = sum_d q[n, d] * k[m, d]   (no explicit k transpose)
    s = lax.dot_general(q, k, (((1,), (1,)), ((), ())),
                        preferred_element_type=jnp.float32) * inv_sqrt_d
    s_max = jnp.max(s, axis=-1, keepdims=True)
    p = jnp.exp(s - s_max)                       # single EUP pass
    p = p / jnp.sum(p, axis=-1, keepdims=True)
    av = jnp.dot(p, v, preferred_element_type=jnp.float32)

    # --- residual + layernorm1 (dropout == identity at inference) ---
    h = _layer_norm(x + av, g1_ref[...], bta1_ref[...], eps)

    # --- FFN: linear -> relu -> linear ---
    f = jnp.dot(h, w1_ref[...], preferred_element_type=jnp.float32) + bb1_ref[...]
    f = jnp.maximum(f, 0.0)
    f = jnp.dot(f, w2_ref[...], preferred_element_type=jnp.float32) + bb2_ref[...]

    # --- residual + layernorm2 ---
    out = _layer_norm(h + f, g2_ref[...], bta2_ref[...], eps)
    o_ref[0] = out.astype(o_ref.dtype)


def actor_transformer_forward(x, params, *, temporal_pooled_first, eps=1e-5):
    """x: (B, T, N, D) f32. Returns (B, N, D) if temporal_pooled_first else (B*T, N, D)."""
    B, T, N, D = x.shape
    if temporal_pooled_first:
        xb = jnp.mean(x, axis=1)                 # (B, N, D)
    else:
        xb = x.reshape(B * T, N, D)              # (B*T, N, D)
    BT = xb.shape[0]

    # Trace-time layout prep: pre-transpose Linear weights (PyTorch stores (out, in)),
    # lift 1-D params to (1, D) so kernel refs stay 2-D / lane-dense.
    wq_t = params["wq"].T
    wk_t = params["wk"].T
    wv_t = params["wv"].T
    w1_t = params["w1"].T
    w2_t = params["w2"].T
    g1 = params["ln1_g"].reshape(1, D)
    b1 = params["ln1_b"].reshape(1, D)
    g2 = params["ln2_g"].reshape(1, D)
    b2 = params["ln2_b"].reshape(1, D)
    fb1 = params["b1"].reshape(1, D)
    fb2 = params["b2"].reshape(1, D)

    kernel = functools.partial(
        _actor_transformer_kernel,
        inv_sqrt_d=1.0 / math.sqrt(D),
        eps=float(eps),
    )

    mat_spec = pl.BlockSpec((D, D), lambda b: (0, 0))
    vec_spec = pl.BlockSpec((1, D), lambda b: (0, 0))

    out = pl.pallas_call(
        kernel,
        out_shape=jax.ShapeDtypeStruct((BT, N, D), jnp.float32),
        grid=(BT,),
        in_specs=[
            pl.BlockSpec((1, N, D), lambda b: (b, 0, 0)),  # x
            mat_spec, mat_spec, mat_spec,                  # Wq^T, Wk^T, Wv^T
            vec_spec, vec_spec,                            # ln1 gamma, beta
            mat_spec, vec_spec,                            # W1^T, b1
            mat_spec, vec_spec,                            # W2^T, b2
            vec_spec, vec_spec,                            # ln2 gamma, beta
        ],
        out_specs=pl.BlockSpec((1, N, D), lambda b: (b, 0, 0)),
        compiler_params=pltpu.CompilerParams(dimension_semantics=("parallel",)),
    )(xb, wq_t, wk_t, wv_t, g1, b1, w1_t, fb1, w2_t, fb2, g2, b2)
    return out


# ----------------------- pure-JAX reference (PyTorch mirror) -----------------------

def _ln_ref(h, gamma, beta, eps=1e-5):
    mean = jnp.mean(h, axis=-1, keepdims=True)
    c = h - mean
    var = jnp.mean(c * c, axis=-1, keepdims=True)
    return c / jnp.sqrt(var + eps) * gamma + beta


def _reference_actor_transformer(x, params, *, temporal_pooled_first, eps=1e-5):
    B, T, N, D = x.shape
    xb = jnp.mean(x, axis=1) if temporal_pooled_first else x.reshape(B * T, N, D)
    q = xb @ params["wq"].T
    k = xb @ params["wk"].T
    v = xb @ params["wv"].T
    att = jnp.einsum("bnd,bmd->bnm", q, k) / math.sqrt(D)
    att = jax.nn.softmax(att, axis=-1)
    av = jnp.einsum("bnm,bmd->bnd", att, v)
    h = _ln_ref(xb + av, params["ln1_g"], params["ln1_b"], eps)
    f = jnp.maximum(h @ params["w1"].T + params["b1"], 0.0)
    f = f @ params["w2"].T + params["b2"]
    return _ln_ref(h + f, params["ln2_g"], params["ln2_b"], eps)


def init_actor_transformer_params(key, in_dim):
    ks = jax.random.split(key, 9)
    lim = 1.0 / math.sqrt(in_dim)

    def lin_w(k):
        return jax.random.uniform(k, (in_dim, in_dim), jnp.float32, -lim, lim)

    def lin_b(k):
        return jax.random.uniform(k, (in_dim,), jnp.float32, -lim, lim)

    return {
        "wq": lin_w(ks[0]),
        "wk": lin_w(ks[1]),
        "wv": lin_w(ks[2]),
        "w1": lin_w(ks[3]),
        "b1": lin_b(ks[4]),
        "w2": lin_w(ks[5]),
        "b2": lin_b(ks[6]),
        # non-trivial LN affine params so the test exercises scale/shift
        "ln1_g": 1.0 + 0.1 * jax.random.normal(ks[7], (in_dim,), jnp.float32),
        "ln1_b": 0.1 * jax.random.normal(ks[7], (in_dim,), jnp.float32),
        "ln2_g": 1.0 + 0.1 * jax.random.normal(ks[8], (in_dim,), jnp.float32),
        "ln2_b": 0.1 * jax.random.normal(ks[8], (in_dim,), jnp.float32),
    }


if __name__ == "__main__":
    B, T, N, D = 2, 4, 8, 32

    key = jax.random.PRNGKey(0)
    kx, kp = jax.random.split(key)
    x = jax.random.normal(kx, (B, T, N, D), jnp.float32)
    params = init_actor_transformer_params(kp, D)

    ok = True
    for pooled in (True, False):
        out = actor_transformer_forward(x, params, temporal_pooled_first=pooled)
        out = jax.block_until_ready(out)
        ref = _reference_actor_transformer(x, params, temporal_pooled_first=pooled)
        ref = jax.block_until_ready(ref)
        expected = (B, N, D) if pooled else (B * T, N, D)
        assert out.shape == expected, (out.shape, expected)
        if not jnp.allclose(out, ref, atol=1e-4, rtol=1e-4):
            ok = False

    if ok:
        print("KERNEL_OK")
</pallas_src>

<mosaic_0001>
module attributes {stable_mosaic.version = 11 : i64} {
  func.func @_actor_transformer_kernel(%arg0: i32, %arg1: memref<1x8x32xf32, #tpu.memory_space<vmem>>, %arg2: memref<32x32xf32, #tpu.memory_space<vmem>>, %arg3: memref<32x32xf32, #tpu.memory_space<vmem>>, %arg4: memref<32x32xf32, #tpu.memory_space<vmem>>, %arg5: memref<1x32xf32, #tpu.memory_space<vmem>>, %arg6: memref<1x32xf32, #tpu.memory_space<vmem>>, %arg7: memref<32x32xf32, #tpu.memory_space<vmem>>, %arg8: memref<1x32xf32, #tpu.memory_space<vmem>>, %arg9: memref<32x32xf32, #tpu.memory_space<vmem>>, %arg10: memref<1x32xf32, #tpu.memory_space<vmem>>, %arg11: memref<1x32xf32, #tpu.memory_space<vmem>>, %arg12: memref<1x32xf32, #tpu.memory_space<vmem>>, %arg13: memref<1x8x32xf32, #tpu.memory_space<vmem>>) attributes {dimension_semantics = [#tpu.dimension_semantics<parallel>], iteration_bounds = array<i64: 2>, scalar_prefetch = 0 : i64, scratch_operands = 0 : i64, tpu.core_type = #tpu.core_type<tc>, window_params = [{transform_indices = @transform_0, window_bounds = array<i64: 1, 8, 32>}, {pipeline_mode = #tpu.pipeline_mode<synchronous>, transform_indices = @transform_1, window_bounds = array<i64: 32, 32>}, {pipeline_mode = #tpu.pipeline_mode<synchronous>, transform_indices = @transform_2, window_bounds = array<i64: 32, 32>}, {pipeline_mode = #tpu.pipeline_mode<synchronous>, transform_indices = @transform_3, window_bounds = array<i64: 32, 32>}, {pipeline_mode = #tpu.pipeline_mode<synchronous>, transform_indices = @transform_4, window_bounds = array<i64: 1, 32>}, {pipeline_mode = #tpu.pipeline_mode<synchronous>, transform_indices = @transform_5, window_bounds = array<i64: 1, 32>}, {pipeline_mode = #tpu.pipeline_mode<synchronous>, transform_indices = @transform_6, window_bounds = array<i64: 32, 32>}, {pipeline_mode = #tpu.pipeline_mode<synchronous>, transform_indices = @transform_7, window_bounds = array<i64: 1, 32>}, {pipeline_mode = #tpu.pipeline_mode<synchronous>, transform_indices = @transform_8, window_bounds = array<i64: 32, 32>}, {pipeline_mode = #tpu.pipeline_mode<synchronous>, transform_indices = @transform_9, window_bounds = array<i64: 1, 32>}, {pipeline_mode = #tpu.pipeline_mode<synchronous>, transform_indices = @transform_10, window_bounds = array<i64: 1, 32>}, {pipeline_mode = #tpu.pipeline_mode<synchronous>, transform_indices = @transform_11, window_bounds = array<i64: 1, 32>}, {transform_indices = @transform_12, window_bounds = array<i64: 1, 8, 32>}]} {
    %c0 = arith.constant 0 : index
    %c0_0 = arith.constant 0 : index
    %c0_1 = arith.constant 0 : index
    %0 = vector.load %arg1[%c0, %c0_0, %c0_1] : memref<1x8x32xf32, #tpu.memory_space<vmem>>, vector<1x8x32xf32>
    %1 = vector.shape_cast %0 : vector<1x8x32xf32> to vector<8x32xf32>
    %c0_2 = arith.constant 0 : index
    %c0_3 = arith.constant 0 : index
    %2 = vector.load %arg2[%c0_2, %c0_3] : memref<32x32xf32, #tpu.memory_space<vmem>>, vector<32x32xf32>
    %cst = arith.constant dense<0.000000e+00> : vector<8x32xf32>
    %3 = tpu.matmul %1, %2, %cst {dimension_numbers = #tpu.dot_dimension_numbers<[1], [0], [0], [1], [0, 0, 1, 1], [], []>} : vector<8x32xf32>, vector<32x32xf32>, vector<8x32xf32> -> vector<8x32xf32>
    %c0_4 = arith.constant 0 : index
    %c0_5 = arith.constant 0 : index
    %4 = vector.load %arg3[%c0_4, %c0_5] : memref<32x32xf32, #tpu.memory_space<vmem>>, vector<32x32xf32>
    %cst_6 = arith.constant dense<0.000000e+00> : vector<8x32xf32>
    %5 = tpu.matmul %1, %4, %cst_6 {dimension_numbers = #tpu.dot_dimension_numbers<[1], [0], [0], [1], [0, 0, 1, 1], [], []>} : vector<8x32xf32>, vector<32x32xf32>, vector<8x32xf32> -> vector<8x32xf32>
    %c0_7 = arith.constant 0 : index
    %c0_8 = arith.constant 0 : index
    %6 = vector.load %arg4[%c0_7, %c0_8] : memref<32x32xf32, #tpu.memory_space<vmem>>, vector<32x32xf32>
    %cst_9 = arith.constant dense<0.000000e+00> : vector<8x32xf32>
    %7 = tpu.matmul %1, %6, %cst_9 {dimension_numbers = #tpu.dot_dimension_numbers<[1], [0], [0], [1], [0, 0, 1, 1], [], []>} : vector<8x32xf32>, vector<32x32xf32>, vector<8x32xf32> -> vector<8x32xf32>
    %cst_10 = arith.constant dense<0.000000e+00> : vector<8x8xf32>
    %8 = tpu.matmul %3, %5, %cst_10 {dimension_numbers = #tpu.dot_dimension_numbers<[1], [1], [0], [0], [0, 0, 1, 0], [], []>} : vector<8x32xf32>, vector<8x32xf32>, vector<8x8xf32> -> vector<8x8xf32>
    %cst_11 = arith.constant 0.176776692 : f32
    %9 = vector.broadcast %cst_11 : f32 to vector<8x8xf32>
    %10 = arith.mulf %8, %9 : vector<8x8xf32>
    %cst_12 = arith.constant dense<0xFF800000> : vector<8xf32>
    %11 = vector.multi_reduction <maximumf>, %10, %cst_12 [1] : vector<8x8xf32> to vector<8xf32>
    %12 = vector.shape_cast %11 : vector<8xf32> to vector<8x1xf32>
    %13 = vector.broadcast %12 : vector<8x1xf32> to vector<8x8xf32>
    %14 = arith.subf %10, %13 : vector<8x8xf32>
    %15 = math.exp %14 : vector<8x8xf32>
    %cst_13 = arith.constant dense<0.000000e+00> : vector<8xf32>
    %16 = vector.multi_reduction <add>, %15, %cst_13 [1] : vector<8x8xf32> to vector<8xf32>
    %17 = vector.shape_cast %16 : vector<8xf32> to vector<8x1xf32>
    %18 = vector.broadcast %17 : vector<8x1xf32> to vector<8x8xf32>
    %19 = arith.divf %15, %18 : vector<8x8xf32>
    %cst_14 = arith.constant dense<0.000000e+00> : vector<8x32xf32>
    %20 = tpu.matmul %19, %7, %cst_14 {dimension_numbers = #tpu.dot_dimension_numbers<[1], [0], [0], [1], [0, 0, 1, 1], [], []>} : vector<8x8xf32>, vector<8x32xf32>, vector<8x32xf32> -> vector<8x32xf32>
    %21 = arith.addf %1, %20 : vector<8x32xf32>
    %c0_15 = arith.constant 0 : index
    %c0_16 = arith.constant 0 : index
    %22 = vector.load %arg5[%c0_15, %c0_16] : memref<1x32xf32, #tpu.memory_space<vmem>>, vector<1x32xf32>
    %c0_17 = arith.constant 0 : index
    %c0_18 = arith.constant 0 : index
    %23 = vector.load %arg6[%c0_17, %c0_18] : memref<1x32xf32, #tpu.memory_space<vmem>>, vector<1x32xf32>
    %cst_19 = arith.constant dense<0.000000e+00> : vector<8xf32>
    %24 = vector.multi_reduction <add>, %21, %cst_19 [1] : vector<8x32xf32> to vector<8xf32>
    %25 = vector.shape_cast %24 : vector<8xf32> to vector<8x1xf32>
    %cst_20 = arith.constant 3.200000e+01 : f32
    %26 = vector.broadcast %cst_20 : f32 to vector<8x1xf32>
    %27 = arith.divf %25, %26 : vector<8x1xf32>
    %28 = vector.broadcast %27 : vector<8x1xf32> to vector<8x32xf32>
    %29 = arith.subf %21, %28 : vector<8x32xf32>
    %30 = arith.mulf %29, %29 : vector<8x32xf32>
    %cst_21 = arith.constant dense<0.000000e+00> : vector<8xf32>
    %31 = vector.multi_reduction <add>, %30, %cst_21 [1] : vector<8x32xf32> to vector<8xf32>
    %32 = vector.shape_cast %31 : vector<8xf32> to vector<8x1xf32>
    %cst_22 = arith.constant 3.200000e+01 : f32
    %33 = vector.broadcast %cst_22 : f32 to vector<8x1xf32>
    %34 = arith.divf %32, %33 : vector<8x1xf32>
    %cst_23 = arith.constant 9.99999974E-6 : f32
    %35 = vector.broadcast %cst_23 : f32 to vector<8x1xf32>
    %36 = arith.addf %34, %35 : vector<8x1xf32>
    %37 = math.rsqrt %36 : vector<8x1xf32>
    %38 = vector.broadcast %37 : vector<8x1xf32> to vector<8x32xf32>
    %39 = arith.mulf %29, %38 : vector<8x32xf32>
    %40 = vector.broadcast %22 : vector<1x32xf32> to vector<8x32xf32>
    %41 = arith.mulf %39, %40 : vector<8x32xf32>
    %42 = vector.broadcast %23 : vector<1x32xf32> to vector<8x32xf32>
    %43 = arith.addf %41, %42 : vector<8x32xf32>
    %c0_24 = arith.constant 0 : index
    %c0_25 = arith.constant 0 : index
    %44 = vector.load %arg7[%c0_24, %c0_25] : memref<32x32xf32, #tpu.memory_space<vmem>>, vector<32x32xf32>
    %cst_26 = arith.constant dense<0.000000e+00> : vector<8x32xf32>
    %45 = tpu.matmul %43, %44, %cst_26 {dimension_numbers = #tpu.dot_dimension_numbers<[1], [0], [0], [1], [0, 0, 1, 1], [], []>} : vector<8x32xf32>, vector<32x32xf32>, vector<8x32xf32> -> vector<8x32xf32>
    %c0_27 = arith.constant 0 : index
    %c0_28 = arith.constant 0 : index
    %46 = vector.load %arg8[%c0_27, %c0_28] : memref<1x32xf32, #tpu.memory_space<vmem>>, vector<1x32xf32>
    %47 = vector.broadcast %46 : vector<1x32xf32> to vector<8x32xf32>
    %48 = arith.addf %45, %47 : vector<8x32xf32>
    %cst_29 = arith.constant 0.000000e+00 : f32
    %49 = vector.broadcast %cst_29 : f32 to vector<8x32xf32>
    %50 = arith.maximumf %48, %49 : vector<8x32xf32>
    %c0_30 = arith.constant 0 : index
    %c0_31 = arith.constant 0 : index
    %51 = vector.load %arg9[%c0_30, %c0_31] : memref<32x32xf32, #tpu.memory_space<vmem>>, vector<32x32xf32>
    %cst_32 = arith.constant dense<0.000000e+00> : vector<8x32xf32>
    %52 = tpu.matmul %50, %51, %cst_32 {dimension_numbers = #tpu.dot_dimension_numbers<[1], [0], [0], [1], [0, 0, 1, 1], [], []>} : vector<8x32xf32>, vector<32x32xf32>, vector<8x32xf32> -> vector<8x32xf32>
    %c0_33 = arith.constant 0 : index
    %c0_34 = arith.constant 0 : index
    %53 = vector.load %arg10[%c0_33, %c0_34] : memref<1x32xf32, #tpu.memory_space<vmem>>, vector<1x32xf32>
    %54 = vector.broadcast %53 : vector<1x32xf32> to vector<8x32xf32>
    %55 = arith.addf %52, %54 : vector<8x32xf32>
    %56 = arith.addf %43, %55 : vector<8x32xf32>
    %c0_35 = arith.constant 0 : index
    %c0_36 = arith.constant 0 : index
    %57 = vector.load %arg11[%c0_35, %c0_36] : memref<1x32xf32, #tpu.memory_space<vmem>>, vector<1x32xf32>
    %c0_37 = arith.constant 0 : index
    %c0_38 = arith.constant 0 : index
    %58 = vector.load %arg12[%c0_37, %c0_38] : memref<1x32xf32, #tpu.memory_space<vmem>>, vector<1x32xf32>
    %cst_39 = arith.constant dense<0.000000e+00> : vector<8xf32>
    %59 = vector.multi_reduction <add>, %56, %cst_39 [1] : vector<8x32xf32> to vector<8xf32>
    %60 = vector.shape_cast %59 : vector<8xf32> to vector<8x1xf32>
    %cst_40 = arith.constant 3.200000e+01 : f32
    %61 = vector.broadcast %cst_40 : f32 to vector<8x1xf32>
    %62 = arith.divf %60, %61 : vector<8x1xf32>
    %63 = vector.broadcast %62 : vector<8x1xf32> to vector<8x32xf32>
    %64 = arith.subf %56, %63 : vector<8x32xf32>
    %65 = arith.mulf %64, %64 : vector<8x32xf32>
    %cst_41 = arith.constant dense<0.000000e+00> : vector<8xf32>
    %66 = vector.multi_reduction <add>, %65, %cst_41 [1] : vector<8x32xf32> to vector<8xf32>
    %67 = vector.shape_cast %66 : vector<8xf32> to vector<8x1xf32>
    %cst_42 = arith.constant 3.200000e+01 : f32
    %68 = vector.broadcast %cst_42 : f32 to vector<8x1xf32>
    %69 = arith.divf %67, %68 : vector<8x1xf32>
    %cst_43 = arith.constant 9.99999974E-6 : f32
    %70 = vector.broadcast %cst_43 : f32 to vector<8x1xf32>
    %71 = arith.addf %69, %70 : vector<8x1xf32>
    %72 = math.rsqrt %71 : vector<8x1xf32>
    %73 = vector.broadcast %72 : vector<8x1xf32> to vector<8x32xf32>
    %74 = arith.mulf %64, %73 : vector<8x32xf32>
    %75 = vector.broadcast %57 : vector<1x32xf32> to vector<8x32xf32>
    %76 = arith.mulf %74, %75 : vector<8x32xf32>
    %77 = vector.broadcast %58 : vector<1x32xf32> to vector<8x32xf32>
    %78 = arith.addf %76, %77 : vector<8x32xf32>
    %c0_44 = arith.constant 0 : index
    %c0_45 = arith.constant 0 : index
    %c0_46 = arith.constant 0 : index
    %79 = vector.load %arg13[%c0_44, %c0_45, %c0_46] : memref<1x8x32xf32, #tpu.memory_space<vmem>>, vector<1x8x32xf32>
    %80 = vector.shape_cast %79 : vector<1x8x32xf32> to vector<8x32xf32>
    %81 = vector.shape_cast %78 : vector<8x32xf32> to vector<1x8x32xf32>
    tpu.vector_store %arg13[%c0_44, %c0_45, %c0_46], %81 {strides = array<i32>} : memref<1x8x32xf32, #tpu.memory_space<vmem>>, vector<1x8x32xf32>,
    return
  }
  func.func @transform_0(%arg0: i32) -> (i32, i32, i32) {
    %c0_i32 = arith.constant 0 : i32
    %c0_i32_0 = arith.constant 0 : i32
    %c0_i32_1 = arith.constant 0 : i32
    return %arg0, %c0_i32, %c0_i32_0 : i32, i32, i32
  }
  func.func @transform_1(%arg0: i32) -> (i32, i32) {
    %c0_i32 = arith.constant 0 : i32
    %c0_i32_0 = arith.constant 0 : i32
    %c0_i32_1 = arith.constant 0 : i32
    return %c0_i32, %c0_i32_0 : i32, i32
  }
  func.func @transform_2(%arg0: i32) -> (i32, i32) {
    %c0_i32 = arith.constant 0 : i32
    %c0_i32_0 = arith.constant 0 : i32
    %c0_i32_1 = arith.constant 0 : i32
    return %c0_i32, %c0_i32_0 : i32, i32
  }
  func.func @transform_3(%arg0: i32) -> (i32, i32) {
    %c0_i32 = arith.constant 0 : i32
    %c0_i32_0 = arith.constant 0 : i32
    %c0_i32_1 = arith.constant 0 : i32
    return %c0_i32, %c0_i32_0 : i32, i32
  }
  func.func @transform_4(%arg0: i32) -> (i32, i32) {
    %c0_i32 = arith.constant 0 : i32
    %c0_i32_0 = arith.constant 0 : i32
    %c0_i32_1 = arith.constant 0 : i32
    return %c0_i32, %c0_i32_0 : i32, i32
  }
  func.func @transform_5(%arg0: i32) -> (i32, i32) {
    %c0_i32 = arith.constant 0 : i32
    %c0_i32_0 = arith.constant 0 : i32
    %c0_i32_1 = arith.constant 0 : i32
    return %c0_i32, %c0_i32_0 : i32, i32
  }
  func.func @transform_6(%arg0: i32) -> (i32, i32) {
    %c0_i32 = arith.constant 0 : i32
    %c0_i32_0 = arith.constant 0 : i32
    %c0_i32_1 = arith.constant 0 : i32
    return %c0_i32, %c0_i32_0 : i32, i32
  }
  func.func @transform_7(%arg0: i32) -> (i32, i32) {
    %c0_i32 = arith.constant 0 : i32
    %c0_i32_0 = arith.constant 0 : i32
    %c0_i32_1 = arith.constant 0 : i32
    return %c0_i32, %c0_i32_0 : i32, i32
  }
  func.func @transform_8(%arg0: i32) -> (i32, i32) {
    %c0_i32 = arith.constant 0 : i32
    %c0_i32_0 = arith.constant 0 : i32
    %c0_i32_1 = arith.constant 0 : i32
    return %c0_i32, %c0_i32_0 : i32, i32
  }
  func.func @transform_9(%arg0: i32) -> (i32, i32) {
    %c0_i32 = arith.constant 0 : i32
    %c0_i32_0 = arith.constant 0 : i32
    %c0_i32_1 = arith.constant 0 : i32
    return %c0_i32, %c0_i32_0 : i32, i32
  }
  func.func @transform_10(%arg0: i32) -> (i32, i32) {
    %c0_i32 = arith.constant 0 : i32
    %c0_i32_0 = arith.constant 0 : i32
    %c0_i32_1 = arith.constant 0 : i32
    return %c0_i32, %c0_i32_0 : i32, i32
  }
  func.func @transform_11(%arg0: i32) -> (i32, i32) {
    %c0_i32 = arith.constant 0 : i32
    %c0_i32_0 = arith.constant 0 : i32
    %c0_i32_1 = arith.constant 0 : i32
    return %c0_i32, %c0_i32_0 : i32, i32
  }
  func.func @transform_12(%arg0: i32) -> (i32, i32, i32) {
    %c0_i32 = arith.constant 0 : i32
    %c0_i32_0 = arith.constant 0 : i32
    %c0_i32_1 = arith.constant 0 : i32
    return %arg0, %c0_i32, %c0_i32_0 : i32, i32, i32
  }
}

</mosaic_0001>

<llo_original>
// kernel: tpu_custom_call.1
$region0: #{tpu_custom_call.1}
  #allocation0 [shape = 'u32[]', space=smem, size = 0x4, offset = 0x4, fixed_abs, tag = 'smem constant byte address 0x4 - core index']
  #allocation1 [shape = 'u32[144,128]{1,0:T(1,128)}', space=vmem, size = 0x12000, scoped, tag = 'internal scratch']
  %s0 = inlined_call_operand.hbm [shape: f32[2,8,32], index: 0, kind: input, shape index: {}]
  %s1 = inlined_call_operand.hbm [shape: f32[32,32], index: 1, kind: input, shape index: {}]
  %s2 = inlined_call_operand.hbm [shape: f32[32,32], index: 2, kind: input, shape index: {}]
  %s3 = inlined_call_operand.hbm [shape: f32[32,32], index: 3, kind: input, shape index: {}]
  %s4 = inlined_call_operand.vmem [shape: f32[1,32], index: 4, kind: input, shape index: {}]
  %s5 = inlined_call_operand.vmem [shape: f32[1,32], index: 5, kind: input, shape index: {}]
  %s6 = inlined_call_operand.hbm [shape: f32[32,32], index: 6, kind: input, shape index: {}]
  %s7 = inlined_call_operand.vmem [shape: f32[1,32], index: 7, kind: input, shape index: {}]
  %s8 = inlined_call_operand.hbm [shape: f32[32,32], index: 8, kind: input, shape index: {}]
  %s9 = inlined_call_operand.vmem [shape: f32[1,32], index: 9, kind: input, shape index: {}]
  %s10 = inlined_call_operand.vmem [shape: f32[1,32], index: 10, kind: input, shape index: {}]
  %s11 = inlined_call_operand.vmem [shape: f32[1,32], index: 11, kind: input, shape index: {}]
  %s12 = inlined_call_operand.hbm [shape: f32[2,8,32], index: 12, kind: output, shape index: {}]
  %s13 = sld [smem:[#allocation0]]
  $region105: #{tpu_custom_call.1} parent=0
    _
  %s15 = ssub.s32 1, %s13
  %s16 = scalar_select 0, %s15, %s13
  $region1: #{tpu_custom_call.1} parent=0
    #allocation2 [shape = 'u8[8192]{0}', space=vmem, size = 0x2000, scoped, tag = 'input window, operand 0']
    #allocation3 [shape = 's32[2]{0}', space=sflag, size = 0x8, scoped, tag = 'scoped memory for tpu_custom_call.1']
    #allocation4 [shape = 's32[2]{0}', space=sflag, size = 0x8, scoped, tag = 'scoped memory for tpu_custom_call.1']
    #allocation5 [shape = 'u8[16384]{0}', space=vmem, size = 0x4000, scoped, tag = 'input window, operand 1, single buffered']
    #allocation6 [shape = 's32[1]{0}', space=sflag, size = 0x4, scoped, tag = 'scoped memory for tpu_custom_call.1']
    #allocation7 [shape = 'u8[16384]{0}', space=vmem, size = 0x4000, scoped, tag = 'input window, operand 2, single buffered']
    #allocation8 [shape = 'u8[16384]{0}', space=vmem, size = 0x4000, scoped, tag = 'input window, operand 3, single buffered']
    #allocation9 [shape = 's32[1]{0}', space=sflag, size = 0x4, scoped, tag = 'scoped memory for tpu_custom_call.1']
    #allocation10 [shape = 'u8[16384]{0}', space=vmem, size = 0x4000, scoped, tag = 'input window, operand 6, single buffered']
    #allocation11 [shape = 'u8[16384]{0}', space=vmem, size = 0x4000, scoped, tag = 'input window, operand 8, single buffered']
    #allocation12 [shape = 's32[1]{0}', space=sflag, size = 0x4, scoped, tag = 'scoped memory for tpu_custom_call.1']
    #allocation13 [shape = 'u8[8192]{0}', space=vmem, size = 0x2000, scoped, tag = 'output window, operand 0']
    %17 = vsyncpa [#allocation3], 0
    %s18 = scalar_lea.sflag [#allocation3], 1
    %19 = vsyncpa %s18, 0
    %20 = vsyncpa [#allocation6], 0
    %21 = vsyncpa [#allocation9], 0
    %22 = vsyncpa [#allocation12], 0
    %23 = vsyncpa [#allocation4], 0
    %s24 = scalar_lea.sflag [#allocation4], 1
    %25 = vsyncpa %s24, 0
    loop: start=0, step=1, limit=4
    $region2: #{tpu_custom_call.1} parent=1 // loop_pre_header
      _
    $region3: #{tpu_custom_call.1} parent=1 // loop_header
      %s27 = sphi 0, %s31
      %p28 = scmp.ge.s32.totalorder %s27, 4
      %s37 = sphi 0, %s39
      %s40 = sphi 0, %s37
      %s41 = sphi 0, %s40
      %s57 = sphi 0, %s41
      %s61 = sphi 0, %s61
      %s63 = sphi 0, %s61
      %s64 = sphi 0, %s63
      %s78 = sphi 0, %s64
      %s82 = sphi 0, %s82
      %s84 = sphi 0, %s82
      %s85 = sphi 0, %s84
      %s99 = sphi 0, %s85
      %s103 = sphi 0, %s103
      %s105 = sphi 0, %s103
      %s106 = sphi 0, %s105
      %s120 = sphi 0, %s106
      %s124 = sphi 0, %s124
      %s126 = sphi 0, %s124
      %s127 = sphi 0, %s126
      %s141 = sphi 0, %s127
      %s145 = sphi 0, %s145
      %s147 = sphi 0, %s145
      %s148 = sphi 0, %s147
      %s162 = sphi 0, %s148
      %s166 = sphi 0, %s166
      %s168 = sphi 0, %s166
      %s169 = sphi 0, %s168
      %s183 = sphi 0, %s169
      %s187 = sphi 0, %s187
      %s189 = sphi 0, %s187
      %s190 = sphi 0, %s189
      %s204 = sphi 0, %s190
      %s208 = sphi 0, %s208
      %s210 = sphi 0, %s208
      %s211 = sphi 0, %s210
      %s225 = sphi 0, %s211
      %s229 = sphi 0, %s229
      %s231 = sphi 0, %s229
      %s232 = sphi 0, %s231
      %s246 = sphi 0, %s232
      %s250 = sphi 0, %s250
      %s252 = sphi 0, %s250
      %s253 = sphi 0, %s252
      %s267 = sphi 0, %s253
      %s271 = sphi 0, %s271
      %s273 = sphi 0, %s271
      %s274 = sphi 0, %s273
      %s288 = sphi 0, %s274
      %s294 = sphi 0, %s296
      %s297 = sphi 0, %s294
      %s298 = sphi 0, %s297
      %s314 = sphi 0, %s298
    $region4: #{tpu_custom_call.1} parent=1 // loop_header_branch
      %30 = sbr.rel (%p28) target = $region8
    $region5: #{tpu_custom_call.1} parent=1 // loop_body
      %s32 = ssub.s32 %s27, 1
      %s33 = ssub.s32 %s27, 2
      %s34 = sadd.s32 %s27, 1
      %s35 = ssub.s32 %s27, %s34
      %p36 = scmp.eq.s32.totalorder %s35, 0
      %s38 = sadd.s32 %s37, 1
      %s39 = scalar_select %p36, %s37, %s38
      %p42 = pneg %p36
      %p43 = scmp.eq.s32.totalorder %s27, 1
      %p44 = por %p42, %p43
      %p45 = scmp.ne.s32.totalorder %s37, %s40
      %p46 = scmp.eq.s32.totalorder %s27, 0
      %p47 = por %p45, %p46
      %p48 = scmp.ne.s32.totalorder %s37, %s40
      %p49 = scmp.eq.s32.totalorder %s32, 1
      %p50 = por %p48, %p49
      %p51 = scmp.ne.s32.totalorder %s40, %s41
      %p52 = scmp.eq.s32.totalorder %s32, 0
      %p53 = por %p51, %p52
      %p54 = scmp.ne.s32.totalorder %s40, %s41
      %p55 = scmp.eq.s32.totalorder %s33, 1
      %p56 = por %p54, %p55
      %p58 = scmp.ne.s32.totalorder %s41, %s57
      %p59 = scmp.eq.s32.totalorder %s33, 0
      %p60 = por %p58, %p59
      %s62 = sadd.s32 %s61, 1
      %p65 = scmp.eq.s32.totalorder %s27, 1
      %p66 = scmp.ne.s32.totalorder %s61, %s63
      %p67 = scmp.eq.s32.totalorder %s27, 0
      %p68 = por %p66, %p67
      %p69 = scmp.ne.s32.totalorder %s61, %s63
      %p70 = scmp.eq.s32.totalorder %s32, 1
      %p71 = por %p69, %p70
      %p72 = scmp.ne.s32.totalorder %s63, %s64
      %p73 = scmp.eq.s32.totalorder %s32, 0
      %p74 = por %p72, %p73
      %p75 = scmp.ne.s32.totalorder %s63, %s64
      %p76 = scmp.eq.s32.totalorder %s33, 1
      %p77 = por %p75, %p76
      %p79 = scmp.ne.s32.totalorder %s64, %s78
      %p80 = scmp.eq.s32.totalorder %s33, 0
      %p81 = por %p79, %p80
      %s83 = sadd.s32 %s82, 1
      %p86 = scmp.eq.s32.totalorder %s27, 1
      %p87 = scmp.ne.s32.totalorder %s82, %s84
      %p88 = scmp.eq.s32.totalorder %s27, 0
      %p89 = por %p87, %p88
      %p90 = scmp.ne.s32.totalorder %s82, %s84
      %p91 = scmp.eq.s32.totalorder %s32, 1
      %p92 = por %p90, %p91
      %p93 = scmp.ne.s32.totalorder %s84, %s85
      %p94 = scmp.eq.s32.totalorder %s32, 0
      %p95 = por %p93, %p94
      %p96 = scmp.ne.s32.totalorder %s84, %s85
      %p97 = scmp.eq.s32.totalorder %s33, 1
      %p98 = por %p96, %p97
      %p100 = scmp.ne.s32.totalorder %s85, %s99
      %p101 = scmp.eq.s32.totalorder %s33, 0
      %p102 = por %p100, %p101
      %s104 = sadd.s32 %s103, 1
      %p107 = scmp.eq.s32.totalorder %s27, 1
      %p108 = scmp.ne.s32.totalorder %s103, %s105
      %p109 = scmp.eq.s32.totalorder %s27, 0
      %p110 = por %p108, %p109
      %p111 = scmp.ne.s32.totalorder %s103, %s105
      %p112 = scmp.eq.s32.totalorder %s32, 1
      %p113 = por %p111, %p112
      %p114 = scmp.ne.s32.totalorder %s105, %s106
      %p115 = scmp.eq.s32.totalorder %s32, 0
      %p116 = por %p114, %p115
      %p117 = scmp.ne.s32.totalorder %s105, %s106
      %p118 = scmp.eq.s32.totalorder %s33, 1
      %p119 = por %p117, %p118
      %p121 = scmp.ne.s32.totalorder %s106, %s120
      %p122 = scmp.eq.s32.totalorder %s33, 0
      %p123 = por %p121, %p122
      %s125 = sadd.s32 %s124, 1
      %p128 = scmp.eq.s32.totalorder %s27, 1
      %p129 = scmp.ne.s32.totalorder %s124, %s126
      %p130 = scmp.eq.s32.totalorder %s27, 0
      %p131 = por %p129, %p130
      %p132 = scmp.ne.s32.totalorder %s124, %s126
      %p133 = scmp.eq.s32.totalorder %s32, 1
      %p134 = por %p132, %p133
      %p135 = scmp.ne.s32.totalorder %s126, %s127
      %p136 = scmp.eq.s32.totalorder %s32, 0
      %p137 = por %p135, %p136
      %p138 = scmp.ne.s32.totalorder %s126, %s127
      %p139 = scmp.eq.s32.totalorder %s33, 1
      %p140 = por %p138, %p139
      %p142 = scmp.ne.s32.totalorder %s127, %s141
      %p143 = scmp.eq.s32.totalorder %s33, 0
      %p144 = por %p142, %p143
      %s146 = sadd.s32 %s145, 1
      %p149 = scmp.eq.s32.totalorder %s27, 1
      %p150 = scmp.ne.s32.totalorder %s145, %s147
      %p151 = scmp.eq.s32.totalorder %s27, 0
      %p152 = por %p150, %p151
      %p153 = scmp.ne.s32.totalorder %s145, %s147
      %p154 = scmp.eq.s32.totalorder %s32, 1
      %p155 = por %p153, %p154
      %p156 = scmp.ne.s32.totalorder %s147, %s148
      %p157 = scmp.eq.s32.totalorder %s32, 0
      %p158 = por %p156, %p157
      %p159 = scmp.ne.s32.totalorder %s147, %s148
      %p160 = scmp.eq.s32.totalorder %s33, 1
      %p161 = por %p159, %p160
      %p163 = scmp.ne.s32.totalorder %s148, %s162
      %p164 = scmp.eq.s32.totalorder %s33, 0
      %p165 = por %p163, %p164
      %s167 = sadd.s32 %s166, 1
      %p170 = scmp.eq.s32.totalorder %s27, 1
      %p171 = scmp.ne.s32.totalorder %s166, %s168
      %p172 = scmp.eq.s32.totalorder %s27, 0
      %p173 = por %p171, %p172
      %p174 = scmp.ne.s32.totalorder %s166, %s168
      %p175 = scmp.eq.s32.totalorder %s32, 1
      %p176 = por %p174, %p175
      %p177 = scmp.ne.s32.totalorder %s168, %s169
      %p178 = scmp.eq.s32.totalorder %s32, 0
      %p179 = por %p177, %p178
      %p180 = scmp.ne.s32.totalorder %s168, %s169
      %p181 = scmp.eq.s32.totalorder %s33, 1
      %p182 = por %p180, %p181
      %p184 = scmp.ne.s32.totalorder %s169, %s183
      %p185 = scmp.eq.s32.totalorder %s33, 0
      %p186 = por %p184, %p185
      %s188 = sadd.s32 %s187, 1
      %p191 = scmp.eq.s32.totalorder %s27, 1
      %p192 = scmp.ne.s32.totalorder %s187, %s189
      %p193 = scmp.eq.s32.totalorder %s27, 0
      %p194 = por %p192, %p193
      %p195 = scmp.ne.s32.totalorder %s187, %s189
      %p196 = scmp.eq.s32.totalorder %s32, 1
      %p197 = por %p195, %p196
      %p198 = scmp.ne.s32.totalorder %s189, %s190
      %p199 = scmp.eq.s32.totalorder %s32, 0
      %p200 = por %p198, %p199
      %p201 = scmp.ne.s32.totalorder %s189, %s190
      %p202 = scmp.eq.s32.totalorder %s33, 1
      %p203 = por %p201, %p202
      %p205 = scmp.ne.s32.totalorder %s190, %s204
      %p206 = scmp.eq.s32.totalorder %s33, 0
      %p207 = por %p205, %p206
      %s209 = sadd.s32 %s208, 1
      %p212 = scmp.eq.s32.totalorder %s27, 1
      %p213 = scmp.ne.s32.totalorder %s208, %s210
      %p214 = scmp.eq.s32.totalorder %s27, 0
      %p215 = por %p213, %p214
      %p216 = scmp.ne.s32.totalorder %s208, %s210
      %p217 = scmp.eq.s32.totalorder %s32, 1
      %p218 = por %p216, %p217
      %p219 = scmp.ne.s32.totalorder %s210, %s211
      %p220 = scmp.eq.s32.totalorder %s32, 0
      %p221 = por %p219, %p220
      %p222 = scmp.ne.s32.totalorder %s210, %s211
      %p223 = scmp.eq.s32.totalorder %s33, 1
      %p224 = por %p222, %p223
      %p226 = scmp.ne.s32.totalorder %s211, %s225
      %p227 = scmp.eq.s32.totalorder %s33, 0
      %p228 = por %p226, %p227
      %s230 = sadd.s32 %s229, 1
      %p233 = scmp.eq.s32.totalorder %s27, 1
      %p234 = scmp.ne.s32.totalorder %s229, %s231
      %p235 = scmp.eq.s32.totalorder %s27, 0
      %p236 = por %p234, %p235
      %p237 = scmp.ne.s32.totalorder %s229, %s231
      %p238 = scmp.eq.s32.totalorder %s32, 1
      %p239 = por %p237, %p238
      %p240 = scmp.ne.s32.totalorder %s231, %s232
      %p241 = scmp.eq.s32.totalorder %s32, 0
      %p242 = por %p240, %p241
      %p243 = scmp.ne.s32.totalorder %s231, %s232
      %p244 = scmp.eq.s32.totalorder %s33, 1
      %p245 = por %p243, %p244
      %p247 = scmp.ne.s32.totalorder %s232, %s246
      %p248 = scmp.eq.s32.totalorder %s33, 0
      %p249 = por %p247, %p248
      %s251 = sadd.s32 %s250, 1
      %p254 = scmp.eq.s32.totalorder %s27, 1
      %p255 = scmp.ne.s32.totalorder %s250, %s252
      %p256 = scmp.eq.s32.totalorder %s27, 0
      %p257 = por %p255, %p256
      %p258 = scmp.ne.s32.totalorder %s250, %s252
      %p259 = scmp.eq.s32.totalorder %s32, 1
      %p260 = por %p258, %p259
      %p261 = scmp.ne.s32.totalorder %s252, %s253
      %p262 = scmp.eq.s32.totalorder %s32, 0
      %p263 = por %p261, %p262
      %p264 = scmp.ne.s32.totalorder %s252, %s253
      %p265 = scmp.eq.s32.totalorder %s33, 1
      %p266 = por %p264, %p265
      %p268 = scmp.ne.s32.totalorder %s253, %s267
      %p269 = scmp.eq.s32.totalorder %s33, 0
      %p270 = por %p268, %p269
      %s272 = sadd.s32 %s271, 1
      %p275 = scmp.eq.s32.totalorder %s27, 1
      %p276 = scmp.ne.s32.totalorder %s271, %s273
      %p277 = scmp.eq.s32.totalorder %s27, 0
      %p278 = por %p276, %p277
      %p279 = scmp.ne.s32.totalorder %s271, %s273
      %p280 = scmp.eq.s32.totalorder %s32, 1
      %p281 = por %p279, %p280
      %p282 = scmp.ne.s32.totalorder %s273, %s274
      %p283 = scmp.eq.s32.totalorder %s32, 0
      %p284 = por %p282, %p283
      %p285 = scmp.ne.s32.totalorder %s273, %s274
      %p286 = scmp.eq.s32.totalorder %s33, 1
      %p287 = por %p285, %p286
      %p289 = scmp.ne.s32.totalorder %s274, %s288
      %p290 = scmp.eq.s32.totalorder %s33, 0
      %p291 = por %p289, %p290
      %s292 = ssub.s32 %s27, %s34
      %p293 = scmp.eq.s32.totalorder %s292, 0
      %s295 = sadd.s32 %s294, 1
      %s296 = scalar_select %p293, %s294, %s295
      %p299 = pneg %p293
      %p300 = scmp.eq.s32.totalorder %s27, 1
      %p301 = por %p299, %p300
      %p302 = scmp.ne.s32.totalorder %s294, %s297
      %p303 = scmp.eq.s32.totalorder %s27, 0
      %p304 = por %p302, %p303
      %p305 = scmp.ne.s32.totalorder %s294, %s297
      %p306 = scmp.eq.s32.totalorder %s32, 1
      %p307 = por %p305, %p306
      %p308 = scmp.ne.s32.totalorder %s297, %s298
      %p309 = scmp.eq.s32.totalorder %s32, 0
      %p310 = por %p308, %p309
      %p311 = scmp.ne.s32.totalorder %s297, %s298
      %p312 = scmp.eq.s32.totalorder %s33, 1
      %p313 = por %p311, %p312
      %p315 = scmp.ne.s32.totalorder %s298, %s314
      %p316 = scmp.eq.s32.totalorder %s33, 0
      %p317 = por %p315, %p316
      %p318 = scmp.le.s32.totalorder 1, %s27
      %p319 = scmp.lt.s32.totalorder %s27, 3
      %p320 = pnand %p318, %p319
      %p321 = pneg %p320
      // Predicated region
      $region9: #{tpu_custom_call.1} parent=5 // pred_check
        _
      $region10: #{tpu_custom_call.1} parent=5 // pred_check_branch
        %323 = sbr.rel (%p320) target = $region12
      $region11: #{tpu_custom_call.1} parent=5 // pred_region
        %s324 = ssub.s32 %s27, 1
        // Predicated region
        $region13: #{tpu_custom_call.1} parent=11 // pred_check
          %p325 = pneg %p74
        $region14: #{tpu_custom_call.1} parent=11 // pred_check_branch
          %327 = sbr.rel (%p325) target = $region16
        $region15: #{tpu_custom_call.1} parent=11 // pred_region
          %s329 = ssub.s32 512, 512
          %330 = vsyncadd [#allocation6], %s329
          %s331 = sshll.u32 [#allocation5], 4
          %s332 = int_to_ptr.vmem [resolvable:$true] %s331
          %337 = dma.hbm_to_vmem [thread:$0]  %s1, 512, %s332, [#allocation6], 128, 128, 8
        $region16: #{tpu_custom_call.1} parent=11 // pred_fallthru
          _
        // Predicated region
        $region17: #{tpu_custom_call.1} parent=11 // pred_check
          %p338 = pneg %p95
        $region18: #{tpu_custom_call.1} parent=11 // pred_check_branch
          %340 = sbr.rel (%p338) target = $region20
        $region19: #{tpu_custom_call.1} parent=11 // pred_region
          %s342 = ssub.s32 512, 512
          %343 = vsyncadd [#allocation6], %s342
          %s344 = sshll.u32 [#allocation7], 4
          %s345 = int_to_ptr.vmem [resolvable:$true] %s344
          %350 = dma.hbm_to_vmem [thread:$0]  %s2, 512, %s345, [#allocation6], 128, 128, 8
        $region20: #{tpu_custom_call.1} parent=11 // pred_fallthru
          _
        // Predicated region
        $region21: #{tpu_custom_call.1} parent=11 // pred_check
          %p351 = pneg %p116
        $region22: #{tpu_custom_call.1} parent=11 // pred_check_branch
          %353 = sbr.rel (%p351) target = $region24
        $region23: #{tpu_custom_call.1} parent=11 // pred_region
          %s355 = ssub.s32 512, 512
          %356 = vsyncadd [#allocation9], %s355
          %s357 = sshll.u32 [#allocation8], 4
          %s358 = int_to_ptr.vmem [resolvable:$true] %s357
          %363 = dma.hbm_to_vmem [thread:$0]  %s3, 512, %s358, [#allocation9], 128, 128, 8
        $region24: #{tpu_custom_call.1} parent=11 // pred_fallthru
          _
        // Predicated region
        $region25: #{tpu_custom_call.1} parent=11 // pred_check
          %p364 = pneg %p137
        $region26: #{tpu_custom_call.1} parent=11 // pred_check_branch
          %366 = sbr.rel (%p364) target = $region28
        $region27: #{tpu_custom_call.1} parent=11 // pred_region
          _
        $region28: #{tpu_custom_call.1} parent=11 // pred_fallthru
          _
        // Predicated region
        $region29: #{tpu_custom_call.1} parent=11 // pred_check
          %p367 = pneg %p158
        $region30: #{tpu_custom_call.1} parent=11 // pred_check_branch
          %369 = sbr.rel (%p367) target = $region32
        $region31: #{tpu_custom_call.1} parent=11 // pred_region
          _
        $region32: #{tpu_custom_call.1} parent=11 // pred_fallthru
          _
        // Predicated region
        $region33: #{tpu_custom_call.1} parent=11 // pred_check
          %p370 = pneg %p179
        $region34: #{tpu_custom_call.1} parent=11 // pred_check_branch
          %372 = sbr.rel (%p370) target = $region36
        $region35: #{tpu_custom_call.1} parent=11 // pred_region
          %s374 = ssub.s32 512, 512
          %375 = vsyncadd [#allocation9], %s374
          %s376 = sshll.u32 [#allocation10], 4
          %s377 = int_to_ptr.vmem [resolvable:$true] %s376
          %382 = dma.hbm_to_vmem [thread:$0]  %s6, 512, %s377, [#allocation9], 128, 128, 8
        $region36: #{tpu_custom_call.1} parent=11 // pred_fallthru
          _
        // Predicated region
        $region37: #{tpu_custom_call.1} parent=11 // pred_check
          %p383 = pneg %p200
        $region38: #{tpu_custom_call.1} parent=11 // pred_check_branch
          %385 = sbr.rel (%p383) target = $region40
        $region39: #{tpu_custom_call.1} parent=11 // pred_region
          _
        $region40: #{tpu_custom_call.1} parent=11 // pred_fallthru
          _
        // Predicated region
        $region41: #{tpu_custom_call.1} parent=11 // pred_check
          %p386 = pneg %p221
        $region42: #{tpu_custom_call.1} parent=11 // pred_check_branch
          %388 = sbr.rel (%p386) target = $region44
        $region43: #{tpu_custom_call.1} parent=11 // pred_region
          %s390 = ssub.s32 512, 512
          %391 = vsyncadd [#allocation12], %s390
          %s392 = sshll.u32 [#allocation11], 4
          %s393 = int_to_ptr.vmem [resolvable:$true] %s392
          %398 = dma.hbm_to_vmem [thread:$0]  %s8, 512, %s393, [#allocation12], 128, 128, 8
        $region44: #{tpu_custom_call.1} parent=11 // pred_fallthru
          _
        // Predicated region
        $region45: #{tpu_custom_call.1} parent=11 // pred_check
          %p399 = pneg %p242
        $region46: #{tpu_custom_call.1} parent=11 // pred_check_branch
          %401 = sbr.rel (%p399) target = $region48
        $region47: #{tpu_custom_call.1} parent=11 // pred_region
          _
        $region48: #{tpu_custom_call.1} parent=11 // pred_fallthru
          _
        // Predicated region
        $region49: #{tpu_custom_call.1} parent=11 // pred_check
          %p402 = pneg %p263
        $region50: #{tpu_custom_call.1} parent=11 // pred_check_branch
          %404 = sbr.rel (%p402) target = $region52
        $region51: #{tpu_custom_call.1} parent=11 // pred_region
          _
        $region52: #{tpu_custom_call.1} parent=11 // pred_fallthru
          _
        // Predicated region
        $region53: #{tpu_custom_call.1} parent=11 // pred_check
          %p405 = pneg %p284
        $region54: #{tpu_custom_call.1} parent=11 // pred_check_branch
          %407 = sbr.rel (%p405) target = $region56
        $region55: #{tpu_custom_call.1} parent=11 // pred_region
          _
        $region56: #{tpu_custom_call.1} parent=11 // pred_fallthru
          _
      $region12: #{tpu_custom_call.1} parent=5 // pred_fallthru
        _
      %p408 = scmp.lt.s32.totalorder %s27, 2
      // Predicated region
      $region57: #{tpu_custom_call.1} parent=5 // pred_check
        %p409 = pneg %p408
      $region58: #{tpu_custom_call.1} parent=5 // pred_check_branch
        %411 = sbr.rel (%p409) target = $region60
      $region59: #{tpu_custom_call.1} parent=5 // pred_region
        // Predicated region
        $region61: #{tpu_custom_call.1} parent=59 // pred_check
          %p412 = pneg %p47
        $region62: #{tpu_custom_call.1} parent=59 // pred_check_branch
          %414 = sbr.rel (%p412) target = $region64
        $region63: #{tpu_custom_call.1} parent=59 // pred_region
          %s415 = sand.u32 %s37, 1
          %s416 = scalar_lea.sflag [#allocation3], %s415
          %s417 = sand.u32 %s37, 1
          %s418 = smul.addr %s417, 8
          %s419 = scalar_lea.vmem [#allocation2], %s418
          %s421 = ssub.s32 128, 128
          %422 = vsyncadd %s416, %s421
          %s423 = smul.addr %s27, 128
          %s424 = scalar_lea.hbm %s0, %s423
          %s426 = sshll.u32 %s419, 4
          %s427 = int_to_ptr.vmem [resolvable:$true] %s426
          %429 = dma.hbm_to_vmem [thread:$0]  %s424, 128, %s427, %s416
        $region64: #{tpu_custom_call.1} parent=59 // pred_fallthru
          _
      $region60: #{tpu_custom_call.1} parent=5 // pred_fallthru
        _
      %p430 = scmp.le.s32.totalorder 1, %s27
      %p431 = scmp.lt.s32.totalorder %s27, 3
      %p432 = pnand %p430, %p431
      %p433 = pneg %p432
      // Predicated region
      $region65: #{tpu_custom_call.1} parent=5 // pred_check
        _
      $region66: #{tpu_custom_call.1} parent=5 // pred_check_branch
        %435 = sbr.rel (%p432) target = $region68
      $region67: #{tpu_custom_call.1} parent=5 // pred_region
        %s436 = ssub.s32 %s27, 1
        %s437 = sand.u32 %s40, 1
        %s438 = scalar_lea.sflag [#allocation3], %s437
        %s439 = sand.u32 %s40, 1
        %s440 = smul.addr %s439, 8
        %s441 = scalar_lea.vmem [#allocation2], %s440
        // Predicated region
        $region69: #{tpu_custom_call.1} parent=67 // pred_check
          %p442 = pneg %p53
        $region70: #{tpu_custom_call.1} parent=67 // pred_check_branch
          %444 = sbr.rel (%p442) target = $region72
        $region71: #{tpu_custom_call.1} parent=67 // pred_region
          %445 = dma.done %s438, 128
        $region72: #{tpu_custom_call.1} parent=67 // pred_fallthru
          _
        // Predicated region
        $region73: #{tpu_custom_call.1} parent=67 // pred_check
          %p446 = pneg %p74
        $region74: #{tpu_custom_call.1} parent=67 // pred_check_branch
          %448 = sbr.rel (%p446) target = $region76
        $region75: #{tpu_custom_call.1} parent=67 // pred_region
          %449 = dma.done [#allocation6], 512
        $region76: #{tpu_custom_call.1} parent=67 // pred_fallthru
          _
        // Predicated region
        $region77: #{tpu_custom_call.1} parent=67 // pred_check
          %p450 = pneg %p95
        $region78: #{tpu_custom_call.1} parent=67 // pred_check_branch
          %452 = sbr.rel (%p450) target = $region80
        $region79: #{tpu_custom_call.1} parent=67 // pred_region
          %453 = dma.done [#allocation6], 512
        $region80: #{tpu_custom_call.1} parent=67 // pred_fallthru
          _
        // Predicated region
        $region81: #{tpu_custom_call.1} parent=67 // pred_check
          %p454 = pneg %p116
        $region82: #{tpu_custom_call.1} parent=67 // pred_check_branch
          %456 = sbr.rel (%p454) target = $region84
        $region83: #{tpu_custom_call.1} parent=67 // pred_region
          %457 = dma.done [#allocation9], 512
        $region84: #{tpu_custom_call.1} parent=67 // pred_fallthru
          _
        // Predicated region
        $region85: #{tpu_custom_call.1} parent=67 // pred_check
          %p458 = pneg %p179
        $region86: #{tpu_custom_call.1} parent=67 // pred_check_branch
          %460 = sbr.rel (%p458) target = $region88
        $region87: #{tpu_custom_call.1} parent=67 // pred_region
          %461 = dma.done [#allocation9], 512
        $region88: #{tpu_custom_call.1} parent=67 // pred_fallthru
          _
        // Predicated region
        $region89: #{tpu_custom_call.1} parent=67 // pred_check
          %p462 = pneg %p221
        $region90: #{tpu_custom_call.1} parent=67 // pred_check_branch
          %464 = sbr.rel (%p462) target = $region92
        $region91: #{tpu_custom_call.1} parent=67 // pred_region
          %465 = dma.done [#allocation12], 512
        $region92: #{tpu_custom_call.1} parent=67 // pred_fallthru
          _
        %s466 = sand.u32 %s40, 1
        %s467 = scalar_lea.sflag [#allocation3], %s466
        %s468 = sand.u32 %s40, 1
        %s469 = smul.addr %s468, 8
        %s470 = scalar_lea.vmem [#allocation2], %s469
        %p471 = pneg %p53
        %p472 = pneg %p50
        %p473 = pneg %p74
        %p474 = pneg %p71
        %p475 = pneg %p95
        %p476 = pneg %p92
        %p477 = pneg %p116
        %p478 = pneg %p113
        %p479 = pneg %p137
        %p480 = pneg %p134
        %p481 = pneg %p158
        %p482 = pneg %p155
        %p483 = pneg %p179
        %p484 = pneg %p176
        %p485 = pneg %p200
        %p486 = pneg %p197
        %p487 = pneg %p221
        %p488 = pneg %p218
        %p489 = pneg %p242
        %p490 = pneg %p239
        %p491 = pneg %p263
        %p492 = pneg %p260
        %p493 = pneg %p284
        %p494 = pneg %p281
        %p495 = pneg %p310
        %p496 = pneg %p307
        %s497 = sand.u32 %s297, 1
        %s498 = scalar_lea.sflag [#allocation4], %s497
        %s499 = sand.u32 %s297, 1
        %s500 = smul.addr %s499, 8
        %s501 = scalar_lea.vmem [#allocation13], %s500
        %v502 = vld [vmem:[%s441] sm:$0xff]
        %v503 = vld [vmem:[#allocation5] sm:$0xff]
        %v504 = vld [vmem:[#allocation5 + $0x8] sm:$0xff]
        %v505 = vld [vmem:[#allocation5 + $0x10] sm:$0xff]
        %v506 = vld [vmem:[#allocation5 + $0x18] sm:$0xff]
        %vm507 = vcmask 261120
        %v509 = vsel %vm507, %v502, 0
        %511 = vmatprep.subr.mxu0 0.0
        %512 = vmatpush1.msra.mxu0 0.0
        %513 = vmatprep.subr.mxu0 0.0
        %514 = vmatpush1.msra.mxu0 0.0
        %515 = vmatprep.subr.mxu0 0.0
        %516 = vmatpush1.msra.mxu0 0.0
        %517 = vmatprep.subr.mxu0 0.0
        %518 = vmatpush1.msra.mxu0 0.0
        %519 = vmatprep.subr.mxu0 0.0
        %520 = vmatpush1.msra.mxu0 0.0
        %521 = vmatprep.subr.mxu0 0.0
        %522 = vmatpush1.msra.mxu0 0.0
        %523 = vmatprep.subr.mxu0 0.0
        %524 = vmatpush1.msra.mxu0 0.0
        %525 = vmatprep.subr.mxu0 0.0
        %526 = vmatpush1.msra.mxu0 0.0
        %527 = vmatprep.subr.mxu0 0.0
        %528 = vmatpush1.msra.mxu0 0.0
        %529 = vmatprep.subr.mxu0 0.0
        %530 = vmatpush1.msra.mxu0 0.0
        %531 = vmatprep.subr.mxu0 0.0
        %532 = vmatpush1.msra.mxu0 0.0
        %533 = vmatprep.subr.mxu0 0.0
        %534 = vmatpush1.msra.mxu0 0.0
        %535 = vmatprep.subr.mxu0 0.0
        %536 = vmatpush1.msra.mxu0 %v506
        %537 = vmatprep.subr.mxu0 0.0
        %538 = vmatpush1.msra.mxu0 %v505
        %539 = vmatprep.subr.mxu0 0.0
        %540 = vmatpush1.msra.mxu0 %v504
        %541 = vmatprep.subr.mxu0 0.0
        %542 = vmatpush1.msra.mxu0 %v503
        %543 = vmatprep.subr.mxu0 0.0
        %544 = vmatpush2.msra.mxu0 0.0
        %545 = vmatprep.subr.mxu0 0.0
        %546 = vmatpush2.msra.mxu0 0.0
        %547 = vmatprep.subr.mxu0 0.0
        %548 = vmatpush2.msra.mxu0 0.0
        %549 = vmatprep.subr.mxu0 0.0
        %550 = vmatpush2.msra.mxu0 0.0
        %551 = vmatprep.subr.mxu0 0.0
        %552 = vmatpush2.msra.mxu0 0.0
        %553 = vmatprep.subr.mxu0 0.0
        %554 = vmatpush2.msra.mxu0 0.0
        %555 = vmatprep.subr.mxu0 0.0
        %556 = vmatpush2.msra.mxu0 0.0
        %557 = vmatprep.subr.mxu0 0.0
        %558 = vmatpush2.msra.mxu0 0.0
        %559 = vmatprep.subr.mxu0 0.0
        %560 = vmatpush2.msra.mxu0 0.0
        %561 = vmatprep.subr.mxu0 0.0
        %562 = vmatpush2.msra.mxu0 0.0
        %563 = vmatprep.subr.mxu0 0.0
        %564 = vmatpush2.msra.mxu0 0.0
        %565 = vmatprep.subr.mxu0 0.0
        %566 = vmatpush2.msra.mxu0 0.0
        %567 = vmatprep.subr.mxu0 0.0
        %568 = vmatpush2.msra.mxu0 0.0
        %569 = vmatprep.subr.mxu0 0.0
        %570 = vmatpush2.msra.mxu0 0.0
        %571 = vmatprep.subr.mxu0 0.0
        %572 = vmatpush2.msra.mxu0 0.0
        %573 = vmatprep.subr.mxu0 0.0
        %574 = vmatpush2.msra.mxu0 0.0
        %575 = vmatprep.mubr.f32.mxu0 0.0
        %576 = vmatmul.mubr.f32.gmra.mxu0 %v509
        %v577 = vpop.f32.mrf.mxu0
        %v578 = vadd.f32 0.0, %v577
        %v579 = vpop.f32.mrf.mxu0
        %580 = vdwg.mxu0
        %v581 = vld [vmem:[#allocation7] sm:$0xff]
        %v582 = vld [vmem:[#allocation7 + $0x8] sm:$0xff]
        %v583 = vld [vmem:[#allocation7 + $0x10] sm:$0xff]
        %v584 = vld [vmem:[#allocation7 + $0x18] sm:$0xff]
        %585 = vmatprep.subr.mxu0 0.0
        %586 = vmatpush1.msra.mxu0 0.0
        %587 = vmatprep.subr.mxu0 0.0
        %588 = vmatpush1.msra.mxu0 0.0
        %589 = vmatprep.subr.mxu0 0.0
        %590 = vmatpush1.msra.mxu0 0.0
        %591 = vmatprep.subr.mxu0 0.0
        %592 = vmatpush1.msra.mxu0 0.0
        %593 = vmatprep.subr.mxu0 0.0
        %594 = vmatpush1.msra.mxu0 0.0
        %595 = vmatprep.subr.mxu0 0.0
        %596 = vmatpush1.msra.mxu0 0.0
        %597 = vmatprep.subr.mxu0 0.0
        %598 = vmatpush1.msra.mxu0 0.0
        %599 = vmatprep.subr.mxu0 0.0
        %600 = vmatpush1.msra.mxu0 0.0
        %601 = vmatprep.subr.mxu0 0.0
        %602 = vmatpush1.msra.mxu0 0.0
        %603 = vmatprep.subr.mxu0 0.0
        %604 = vmatpush1.msra.mxu0 0.0
        %605 = vmatprep.subr.mxu0 0.0
        %606 = vmatpush1.msra.mxu0 0.0
        %607 = vmatprep.subr.mxu0 0.0
        %608 = vmatpush1.msra.mxu0 0.0
        %609 = vmatprep.subr.mxu0 0.0
        %610 = vmatpush1.msra.mxu0 %v584
        %611 = vmatprep.subr.mxu0 0.0
        %612 = vmatpush1.msra.mxu0 %v583
        %613 = vmatprep.subr.mxu0 0.0
        %614 = vmatpush1.msra.mxu0 %v582
        %615 = vmatprep.subr.mxu0 0.0
        %616 = vmatpush1.msra.mxu0 %v581
        %617 = vmatprep.subr.mxu0 0.0
        %618 = vmatpush2.msra.mxu0 0.0
        %619 = vmatprep.subr.mxu0 0.0
        %620 = vmatpush2.msra.mxu0 0.0
        %621 = vmatprep.subr.mxu0 0.0
        %622 = vmatpush2.msra.mxu0 0.0
        %623 = vmatprep.subr.mxu0 0.0
        %624 = vmatpush2.msra.mxu0 0.0
        %625 = vmatprep.subr.mxu0 0.0
        %626 = vmatpush2.msra.mxu0 0.0
        %627 = vmatprep.subr.mxu0 0.0
        %628 = vmatpush2.msra.mxu0 0.0
        %629 = vmatprep.subr.mxu0 0.0
        %630 = vmatpush2.msra.mxu0 0.0
        %631 = vmatprep.subr.mxu0 0.0
        %632 = vmatpush2.msra.mxu0 0.0
        %633 = vmatprep.subr.mxu0 0.0
        %634 = vmatpush2.msra.mxu0 0.0
        %635 = vmatprep.subr.mxu0 0.0
        %636 = vmatpush2.msra.mxu0 0.0
        %637 = vmatprep.subr.mxu0 0.0
        %638 = vmatpush2.msra.mxu0 0.0
        %639 = vmatprep.subr.mxu0 0.0
        %640 = vmatpush2.msra.mxu0 0.0
        %641 = vmatprep.subr.mxu0 0.0
        %642 = vmatpush2.msra.mxu0 0.0
        %643 = vmatprep.subr.mxu0 0.0
        %644 = vmatpush2.msra.mxu0 0.0
        %645 = vmatprep.subr.mxu0 0.0
        %646 = vmatpush2.msra.mxu0 0.0
        %647 = vmatprep.subr.mxu0 0.0
        %648 = vmatpush2.msra.mxu0 0.0
        %649 = vmatprep.mubr.f32.mxu0 0.0
        %650 = vmatmul.mubr.f32.gmra.mxu0 %v509
        %v651 = vpop.f32.mrf.mxu0
        %v652 = vadd.f32 0.0, %v651
        %v653 = vpop.f32.mrf.mxu0
        %654 = vdwg.mxu0
        %v655 = vld [vmem:[#allocation8] sm:$0xff]
        %v656 = vld [vmem:[#allocation8 + $0x8] sm:$0xff]
        %v657 = vld [vmem:[#allocation8 + $0x10] sm:$0xff]
        %v658 = vld [vmem:[#allocation8 + $0x18] sm:$0xff]
        %659 = vmatprep.subr.mxu0 0.0
        %660 = vmatpush1.msra.mxu0 0.0
        %661 = vmatprep.subr.mxu0 0.0
        %662 = vmatpush1.msra.mxu0 0.0
        %663 = vmatprep.subr.mxu0 0.0
        %664 = vmatpush1.msra.mxu0 0.0
        %665 = vmatprep.subr.mxu0 0.0
        %666 = vmatpush1.msra.mxu0 0.0
        %667 = vmatprep.subr.mxu0 0.0
        %668 = vmatpush1.msra.mxu0 0.0
        %669 = vmatprep.subr.mxu0 0.0
        %670 = vmatpush1.msra.mxu0 0.0
        %671 = vmatprep.subr.mxu0 0.0
        %672 = vmatpush1.msra.mxu0 0.0
        %673 = vmatprep.subr.mxu0 0.0
        %674 = vmatpush1.msra.mxu0 0.0
        %675 = vmatprep.subr.mxu0 0.0
        %676 = vmatpush1.msra.mxu0 0.0
        %677 = vmatprep.subr.mxu0 0.0
        %678 = vmatpush1.msra.mxu0 0.0
        %679 = vmatprep.subr.mxu0 0.0
        %680 = vmatpush1.msra.mxu0 0.0
        %681 = vmatprep.subr.mxu0 0.0
        %682 = vmatpush1.msra.mxu0 0.0
        %683 = vmatprep.subr.mxu0 0.0
        %684 = vmatpush1.msra.mxu0 %v658
        %685 = vmatprep.subr.mxu0 0.0
        %686 = vmatpush1.msra.mxu0 %v657
        %687 = vmatprep.subr.mxu0 0.0
        %688 = vmatpush1.msra.mxu0 %v656
        %689 = vmatprep.subr.mxu0 0.0
        %690 = vmatpush1.msra.mxu0 %v655
        %691 = vmatprep.subr.mxu0 0.0
        %692 = vmatpush2.msra.mxu0 0.0
        %693 = vmatprep.subr.mxu0 0.0
        %694 = vmatpush2.msra.mxu0 0.0
        %695 = vmatprep.subr.mxu0 0.0
        %696 = vmatpush2.msra.mxu0 0.0
        %697 = vmatprep.subr.mxu0 0.0
        %698 = vmatpush2.msra.mxu0 0.0
        %699 = vmatprep.subr.mxu0 0.0
        %700 = vmatpush2.msra.mxu0 0.0
        %701 = vmatprep.subr.mxu0 0.0
        %702 = vmatpush2.msra.mxu0 0.0
        %703 = vmatprep.subr.mxu0 0.0
        %704 = vmatpush2.msra.mxu0 0.0
        %705 = vmatprep.subr.mxu0 0.0
        %706 = vmatpush2.msra.mxu0 0.0
        %707 = vmatprep.subr.mxu0 0.0
        %708 = vmatpush2.msra.mxu0 0.0
        %709 = vmatprep.subr.mxu0 0.0
        %710 = vmatpush2.msra.mxu0 0.0
        %711 = vmatprep.subr.mxu0 0.0
        %712 = vmatpush2.msra.mxu0 0.0
        %713 = vmatprep.subr.mxu0 0.0
        %714 = vmatpush2.msra.mxu0 0.0
        %715 = vmatprep.subr.mxu0 0.0
        %716 = vmatpush2.msra.mxu0 0.0
        %717 = vmatprep.subr.mxu0 0.0
        %718 = vmatpush2.msra.mxu0 0.0
        %719 = vmatprep.subr.mxu0 0.0
        %720 = vmatpush2.msra.mxu0 0.0
        %721 = vmatprep.subr.mxu0 0.0
        %722 = vmatpush2.msra.mxu0 0.0
        %723 = vmatprep.mubr.f32.mxu0 0.0
        %724 = vmatmul.mubr.f32.gmra.mxu0 %v509
        %v725 = vpop.f32.mrf.mxu0
        %v726 = vadd.f32 0.0, %v725
        %v727 = vpop.f32.mrf.mxu0
        %728 = vdwg.mxu0
        %v730 = vsel %vm507, %v578, 0
        %v733 = vsel %vm507, %v652, 0
        %735 = vmatprep.subr.mxu0 0.0
        %736 = vmatpush1.xpose.msra.mxu0 0.0
        %737 = vmatprep.subr.mxu0 0.0
        %738 = vmatpush1.xpose.msra.mxu0 0.0
        %739 = vmatprep.subr.mxu0 0.0
        %740 = vmatpush1.xpose.msra.mxu0 0.0
        %741 = vmatprep.subr.mxu0 0.0
        %742 = vmatpush1.xpose.msra.mxu0 0.0
        %743 = vmatprep.subr.mxu0 0.0
        %744 = vmatpush1.xpose.msra.mxu0 0.0
        %745 = vmatprep.subr.mxu0 0.0
        %746 = vmatpush1.xpose.msra.mxu0 0.0
        %747 = vmatprep.subr.mxu0 0.0
        %748 = vmatpush1.xpose.msra.mxu0 0.0
        %749 = vmatprep.subr.mxu0 0.0
        %750 = vmatpush1.xpose.msra.mxu0 0.0
        %751 = vmatprep.subr.mxu0 0.0
        %752 = vmatpush1.xpose.msra.mxu0 0.0
        %753 = vmatprep.subr.mxu0 0.0
        %754 = vmatpush1.xpose.msra.mxu0 0.0
        %755 = vmatprep.subr.mxu0 0.0
        %756 = vmatpush1.xpose.msra.mxu0 0.0
        %757 = vmatprep.subr.mxu0 0.0
        %758 = vmatpush1.xpose.msra.mxu0 0.0
        %759 = vmatprep.subr.mxu0 0.0
        %760 = vmatpush1.xpose.msra.mxu0 0.0
        %761 = vmatprep.subr.mxu0 0.0
        %762 = vmatpush1.xpose.msra.mxu0 0.0
        %763 = vmatprep.subr.mxu0 0.0
        %764 = vmatpush1.xpose.msra.mxu0 0.0
        %765 = vmatprep.subr.mxu0 0.0
        %766 = vmatpush1.xpose.msra.mxu0 %v733
        %767 = vmatprep.subr.mxu0 0.0
        %768 = vmatpush2.xpose.msra.mxu0 0.0
        %769 = vmatprep.subr.mxu0 0.0
        %770 = vmatpush2.xpose.msra.mxu0 0.0
        %771 = vmatprep.subr.mxu0 0.0
        %772 = vmatpush2.xpose.msra.mxu0 0.0
        %773 = vmatprep.subr.mxu0 0.0
        %774 = vmatpush2.xpose.msra.mxu0 0.0
        %775 = vmatprep.subr.mxu0 0.0
        %776 = vmatpush2.xpose.msra.mxu0 0.0
        %777 = vmatprep.subr.mxu0 0.0
        %778 = vmatpush2.xpose.msra.mxu0 0.0
        %779 = vmatprep.subr.mxu0 0.0
        %780 = vmatpush2.xpose.msra.mxu0 0.0
        %781 = vmatprep.subr.mxu0 0.0
        %782 = vmatpush2.xpose.msra.mxu0 0.0
        %783 = vmatprep.subr.mxu0 0.0
        %784 = vmatpush2.xpose.msra.mxu0 0.0
        %785 = vmatprep.subr.mxu0 0.0
        %786 = vmatpush2.xpose.msra.mxu0 0.0
        %787 = vmatprep.subr.mxu0 0.0
        %788 = vmatpush2.xpose.msra.mxu0 0.0
        %789 = vmatprep.subr.mxu0 0.0
        %790 = vmatpush2.xpose.msra.mxu0 0.0
        %791 = vmatprep.subr.mxu0 0.0
        %792 = vmatpush2.xpose.msra.mxu0 0.0
        %793 = vmatprep.subr.mxu0 0.0
        %794 = vmatpush2.xpose.msra.mxu0 0.0
        %795 = vmatprep.subr.mxu0 0.0
        %796 = vmatpush2.xpose.msra.mxu0 0.0
        %797 = vmatprep.subr.mxu0 0.0
        %798 = vmatpush2.xpose.msra.mxu0 0.0
        %799 = vmatprep.mubr.f32.mxu0 0.0
        %800 = vmatmul.mubr.f32.gmra.mxu0 %v730
        %v801 = vpop.f32.mrf.mxu0
        %v802 = vadd.f32 0.0, %v801
        %v803 = vpop.f32.mrf.mxu0
        %804 = vdwg.mxu0
        %v805 = vmul.f32 %v802, 0.17677669
        %vm806 = vcmask 64512
        %v807 = vsel %vm806, %v805, -inf
        %808 = vmax.xlane.f32.xlu0 %v807
        %v809 = vpop.xlane.xlu0 %808
        %v810 = vsub.f32 %v805, %v809
        %v811 = vmul.f32 %v810, 1.442695
        %v812 = vpow.pop %v811
        %v813 = vsel %vm806, %v812, 0.0
        %814 = vadd.xlane.f32.xlu0 %v813
        %v815 = vpop.xlane.xlu0 %814
        %v816 = vrcp.pop %v815
        %v817 = vmul.f32 %v812, %v816
        %v819 = vsel %vm806, %v817, 0
        %821 = vmatprep.subr.mxu0 0.0
        %822 = vmatpush1.msra.mxu0 0.0
        %823 = vmatprep.subr.mxu0 0.0
        %824 = vmatpush1.msra.mxu0 0.0
        %825 = vmatprep.subr.mxu0 0.0
        %826 = vmatpush1.msra.mxu0 0.0
        %827 = vmatprep.subr.mxu0 0.0
        %828 = vmatpush1.msra.mxu0 0.0
        %829 = vmatprep.subr.mxu0 0.0
        %830 = vmatpush1.msra.mxu0 0.0
        %831 = vmatprep.subr.mxu0 0.0
        %832 = vmatpush1.msra.mxu0 0.0
        %833 = vmatprep.subr.mxu0 0.0
        %834 = vmatpush1.msra.mxu0 0.0
        %835 = vmatprep.subr.mxu0 0.0
        %836 = vmatpush1.msra.mxu0 0.0
        %837 = vmatprep.subr.mxu0 0.0
        %838 = vmatpush1.msra.mxu0 0.0
        %839 = vmatprep.subr.mxu0 0.0
        %840 = vmatpush1.msra.mxu0 0.0
        %841 = vmatprep.subr.mxu0 0.0
        %842 = vmatpush1.msra.mxu0 0.0
        %843 = vmatprep.subr.mxu0 0.0
        %844 = vmatpush1.msra.mxu0 0.0
        %845 = vmatprep.subr.mxu0 0.0
        %846 = vmatpush1.msra.mxu0 0.0
        %847 = vmatprep.subr.mxu0 0.0
        %848 = vmatpush1.msra.mxu0 0.0
        %849 = vmatprep.subr.mxu0 0.0
        %850 = vmatpush1.msra.mxu0 0.0
        %851 = vmatprep.subr.mxu0 0.0
        %852 = vmatpush1.msra.mxu0 %v726
        %853 = vmatprep.subr.mxu0 0.0
        %854 = vmatpush2.msra.mxu0 0.0
        %855 = vmatprep.subr.mxu0 0.0
        %856 = vmatpush2.msra.mxu0 0.0
        %857 = vmatprep.subr.mxu0 0.0
        %858 = vmatpush2.msra.mxu0 0.0
        %859 = vmatprep.subr.mxu0 0.0
        %860 = vmatpush2.msra.mxu0 0.0
        %861 = vmatprep.subr.mxu0 0.0
        %862 = vmatpush2.msra.mxu0 0.0
        %863 = vmatprep.subr.mxu0 0.0
        %864 = vmatpush2.msra.mxu0 0.0
        %865 = vmatprep.subr.mxu0 0.0
        %866 = vmatpush2.msra.mxu0 0.0
        %867 = vmatprep.subr.mxu0 0.0
        %868 = vmatpush2.msra.mxu0 0.0
        %869 = vmatprep.subr.mxu0 0.0
        %870 = vmatpush2.msra.mxu0 0.0
        %871 = vmatprep.subr.mxu0 0.0
        %872 = vmatpush2.msra.mxu0 0.0
        %873 = vmatprep.subr.mxu0 0.0
        %874 = vmatpush2.msra.mxu0 0.0
        %875 = vmatprep.subr.mxu0 0.0
        %876 = vmatpush2.msra.mxu0 0.0
        %877 = vmatprep.subr.mxu0 0.0
        %878 = vmatpush2.msra.mxu0 0.0
        %879 = vmatprep.subr.mxu0 0.0
        %880 = vmatpush2.msra.mxu0 0.0
        %881 = vmatprep.subr.mxu0 0.0
        %882 = vmatpush2.msra.mxu0 0.0
        %883 = vmatprep.subr.mxu0 0.0
        %884 = vmatpush2.msra.mxu0 0.0
        %885 = vmatprep.mubr.f32.mxu0 0.0
        %886 = vmatmul.mubr.f32.gmra.mxu0 %v819
        %v887 = vpop.f32.mrf.mxu0
        %v888 = vadd.f32 0.0, %v887
        %v889 = vpop.f32.mrf.mxu0
        %890 = vdwg.mxu0
        %v891 = vadd.f32 %v502, %v888
        %v892 = vld [vmem:[%s4] sm:$0x1]
        %v893 = vld [vmem:[%s5] sm:$0x1]
        %v894 = vsel %vm507, %v891, 0.0
        %895 = vadd.xlane.f32.xlu0 %v894
        %v896 = vpop.xlane.xlu0 %895
        %v897 = vrcp.pop 32.0
        %v898 = vmul.f32 %v896, %v897
        %v899 = vsub.f32 %v891, %v898
        %v900 = vmul.f32 %v899, %v899
        %v901 = vsel %vm507, %v900, 0.0
        %902 = vadd.xlane.f32.xlu0 %v901
        %v903 = vpop.xlane.xlu0 %902
        %v904 = vmul.f32 %v903, %v897
        %v905 = vadd.f32 %v904, 1e-05
        %v906 = vrsqrt.pop %v905
        %v907 = vmul.f32 %v899, %v906
        %v909 = vlaneseq
        %v910 = vshrl.u32 %v909, 7
        %v911 = vsub.s32 0, %v910
        %v912 = vrot.slane %v892, %v911
        %v914 = vmul.f32 %v907, %v912
        %v916 = vlaneseq
        %v917 = vshrl.u32 %v916, 7
        %v918 = vsub.s32 0, %v917
        %v919 = vrot.slane %v893, %v918
        %v921 = vadd.f32 %v914, %v919
        %v922 = vld [vmem:[#allocation10] sm:$0xff]
        %v923 = vld [vmem:[#allocation10 + $0x8] sm:$0xff]
        %v924 = vld [vmem:[#allocation10 + $0x10] sm:$0xff]
        %v925 = vld [vmem:[#allocation10 + $0x18] sm:$0xff]
        %v926 = vld [vmem:[%s7] sm:$0x1]
        %v928 = vlaneseq
        %v929 = vshrl.u32 %v928, 7
        %v930 = vsub.s32 0, %v929
        %v931 = vrot.slane %v926, %v930
        %v934 = vsel %vm507, %v921, 0
        %936 = vmatprep.subr.mxu0 0.0
        %937 = vmatpush1.msra.mxu0 0.0
        %938 = vmatprep.subr.mxu0 0.0
        %939 = vmatpush1.msra.mxu0 0.0
        %940 = vmatprep.subr.mxu0 0.0
        %941 = vmatpush1.msra.mxu0 0.0
        %942 = vmatprep.subr.mxu0 0.0
        %943 = vmatpush1.msra.mxu0 0.0
        %944 = vmatprep.subr.mxu0 0.0
        %945 = vmatpush1.msra.mxu0 0.0
        %946 = vmatprep.subr.mxu0 0.0
        %947 = vmatpush1.msra.mxu0 0.0
        %948 = vmatprep.subr.mxu0 0.0
        %949 = vmatpush1.msra.mxu0 0.0
        %950 = vmatprep.subr.mxu0 0.0
        %951 = vmatpush1.msra.mxu0 0.0
        %952 = vmatprep.subr.mxu0 0.0
        %953 = vmatpush1.msra.mxu0 0.0
        %954 = vmatprep.subr.mxu0 0.0
        %955 = vmatpush1.msra.mxu0 0.0
        %956 = vmatprep.subr.mxu0 0.0
        %957 = vmatpush1.msra.mxu0 0.0
        %958 = vmatprep.subr.mxu0 0.0
        %959 = vmatpush1.msra.mxu0 0.0
        %960 = vmatprep.subr.mxu0 0.0
        %961 = vmatpush1.msra.mxu0 %v925
        %962 = vmatprep.subr.mxu0 0.0
        %963 = vmatpush1.msra.mxu0 %v924
        %964 = vmatprep.subr.mxu0 0.0
        %965 = vmatpush1.msra.mxu0 %v923
        %966 = vmatprep.subr.mxu0 0.0
        %967 = vmatpush1.msra.mxu0 %v922
        %968 = vmatprep.subr.mxu0 0.0
        %969 = vmatpush2.msra.mxu0 0.0
        %970 = vmatprep.subr.mxu0 0.0
        %971 = vmatpush2.msra.mxu0 0.0
        %972 = vmatprep.subr.mxu0 0.0
        %973 = vmatpush2.msra.mxu0 0.0
        %974 = vmatprep.subr.mxu0 0.0
        %975 = vmatpush2.msra.mxu0 0.0
        %976 = vmatprep.subr.mxu0 0.0
        %977 = vmatpush2.msra.mxu0 0.0
        %978 = vmatprep.subr.mxu0 0.0
        %979 = vmatpush2.msra.mxu0 0.0
        %980 = vmatprep.subr.mxu0 0.0
        %981 = vmatpush2.msra.mxu0 0.0
        %982 = vmatprep.subr.mxu0 0.0
        %983 = vmatpush2.msra.mxu0 0.0
        %984 = vmatprep.subr.mxu0 0.0
        %985 = vmatpush2.msra.mxu0 0.0
        %986 = vmatprep.subr.mxu0 0.0
        %987 = vmatpush2.msra.mxu0 0.0
        %988 = vmatprep.subr.mxu0 0.0
        %989 = vmatpush2.msra.mxu0 0.0
        %990 = vmatprep.subr.mxu0 0.0
        %991 = vmatpush2.msra.mxu0 0.0
        %992 = vmatprep.subr.mxu0 0.0
        %993 = vmatpush2.msra.mxu0 0.0
        %994 = vmatprep.subr.mxu0 0.0
        %995 = vmatpush2.msra.mxu0 0.0
        %996 = vmatprep.subr.mxu0 0.0
        %997 = vmatpush2.msra.mxu0 0.0
        %998 = vmatprep.subr.mxu0 0.0
        %999 = vmatpush2.msra.mxu0 0.0
        %1000 = vmatprep.mubr.f32.mxu0 0.0
        %1001 = vmatmul.mubr.f32.gmra.mxu0 %v934
        %v1002 = vpop.f32.mrf.mxu0
        %v1003 = vadd.f32 %v931, %v1002
        %v1004 = vpop.f32.mrf.mxu0
        %1005 = vdwg.mxu0
        %v1006 = vmax.f32 %v1003, 0.0
        %v1007 = vld [vmem:[#allocation11] sm:$0xff]
        %v1008 = vld [vmem:[#allocation11 + $0x8] sm:$0xff]
        %v1009 = vld [vmem:[#allocation11 + $0x10] sm:$0xff]
        %v1010 = vld [vmem:[#allocation11 + $0x18] sm:$0xff]
        %v1011 = vld [vmem:[%s9] sm:$0x1]
        %v1013 = vlaneseq
        %v1014 = vshrl.u32 %v1013, 7
        %v1015 = vsub.s32 0, %v1014
        %v1016 = vrot.slane %v1011, %v1015
        %v1019 = vsel %vm507, %v1006, 0
        %1021 = vmatprep.subr.mxu0 0.0
        %1022 = vmatpush1.msra.mxu0 0.0
        %1023 = vmatprep.subr.mxu0 0.0
        %1024 = vmatpush1.msra.mxu0 0.0
        %1025 = vmatprep.subr.mxu0 0.0
        %1026 = vmatpush1.msra.mxu0 0.0
        %1027 = vmatprep.subr.mxu0 0.0
        %1028 = vmatpush1.msra.mxu0 0.0
        %1029 = vmatprep.subr.mxu0 0.0
        %1030 = vmatpush1.msra.mxu0 0.0
        %1031 = vmatprep.subr.mxu0 0.0
        %1032 = vmatpush1.msra.mxu0 0.0
        %1033 = vmatprep.subr.mxu0 0.0
        %1034 = vmatpush1.msra.mxu0 0.0
        %1035 = vmatprep.subr.mxu0 0.0
        %1036 = vmatpush1.msra.mxu0 0.0
        %1037 = vmatprep.subr.mxu0 0.0
        %1038 = vmatpush1.msra.mxu0 0.0
        %1039 = vmatprep.subr.mxu0 0.0
        %1040 = vmatpush1.msra.mxu0 0.0
        %1041 = vmatprep.subr.mxu0 0.0
        %1042 = vmatpush1.msra.mxu0 0.0
        %1043 = vmatprep.subr.mxu0 0.0
        %1044 = vmatpush1.msra.mxu0 0.0
        %1045 = vmatprep.subr.mxu0 0.0
        %1046 = vmatpush1.msra.mxu0 %v1010
        %1047 = vmatprep.subr.mxu0 0.0
        %1048 = vmatpush1.msra.mxu0 %v1009
        %1049 = vmatprep.subr.mxu0 0.0
        %1050 = vmatpush1.msra.mxu0 %v1008
        %1051 = vmatprep.subr.mxu0 0.0
        %1052 = vmatpush1.msra.mxu0 %v1007
        %1053 = vmatprep.subr.mxu0 0.0
        %1054 = vmatpush2.msra.mxu0 0.0
        %1055 = vmatprep.subr.mxu0 0.0
        %1056 = vmatpush2.msra.mxu0 0.0
        %1057 = vmatprep.subr.mxu0 0.0
        %1058 = vmatpush2.msra.mxu0 0.0
        %1059 = vmatprep.subr.mxu0 0.0
        %1060 = vmatpush2.msra.mxu0 0.0
        %1061 = vmatprep.subr.mxu0 0.0
        %1062 = vmatpush2.msra.mxu0 0.0
        %1063 = vmatprep.subr.mxu0 0.0
        %1064 = vmatpush2.msra.mxu0 0.0
        %1065 = vmatprep.subr.mxu0 0.0
        %1066 = vmatpush2.msra.mxu0 0.0
        %1067 = vmatprep.subr.mxu0 0.0
        %1068 = vmatpush2.msra.mxu0 0.0
        %1069 = vmatprep.subr.mxu0 0.0
        %1070 = vmatpush2.msra.mxu0 0.0
        %1071 = vmatprep.subr.mxu0 0.0
        %1072 = vmatpush2.msra.mxu0 0.0
        %1073 = vmatprep.subr.mxu0 0.0
        %1074 = vmatpush2.msra.mxu0 0.0
        %1075 = vmatprep.subr.mxu0 0.0
        %1076 = vmatpush2.msra.mxu0 0.0
        %1077 = vmatprep.subr.mxu0 0.0
        %1078 = vmatpush2.msra.mxu0 0.0
        %1079 = vmatprep.subr.mxu0 0.0
        %1080 = vmatpush2.msra.mxu0 0.0
        %1081 = vmatprep.subr.mxu0 0.0
        %1082 = vmatpush2.msra.mxu0 0.0
        %1083 = vmatprep.subr.mxu0 0.0
        %1084 = vmatpush2.msra.mxu0 0.0
        %1085 = vmatprep.mubr.f32.mxu0 0.0
        %1086 = vmatmul.mubr.f32.gmra.mxu0 %v1019
        %v1087 = vpop.f32.mrf.mxu0
        %v1088 = vadd.f32 %v1016, %v1087
        %v1089 = vpop.f32.mrf.mxu0
        %1090 = vdwg.mxu0
        %v1091 = vadd.f32 %v921, %v1088
        %v1092 = vld [vmem:[%s10] sm:$0x1]
        %v1093 = vld [vmem:[%s11] sm:$0x1]
        %v1094 = vsel %vm507, %v1091, 0.0
        %1095 = vadd.xlane.f32.xlu0 %v1094
        %v1096 = vpop.xlane.xlu0 %1095
        %v1097 = vmul.f32 %v1096, %v897
        %v1098 = vsub.f32 %v1091, %v1097
        %v1099 = vmul.f32 %v1098, %v1098
        %v1100 = vsel %vm507, %v1099, 0.0
        %1101 = vadd.xlane.f32.xlu0 %v1100
        %v1102 = vpop.xlane.xlu0 %1101
        %v1103 = vmul.f32 %v1102, %v897
        %v1104 = vadd.f32 %v1103, 1e-05
        %v1105 = vrsqrt.pop %v1104
        %v1106 = vmul.f32 %v1098, %v1105
        %v1108 = vlaneseq
        %v1109 = vshrl.u32 %v1108, 7
        %v1110 = vsub.s32 0, %v1109
        %v1111 = vrot.slane %v1092, %v1110
        %v1113 = vmul.f32 %v1106, %v1111
        %v1115 = vlaneseq
        %v1116 = vshrl.u32 %v1115, 7
        %v1117 = vsub.s32 0, %v1116
        %v1118 = vrot.slane %v1093, %v1117
        %v1120 = vadd.f32 %v1113, %v1118
        %1121 = vst.msk [vmem:[%s501] sm:$0xff] %vm507, %v1120
        %s1122 = sand.u32 %s297, 1
        %s1123 = scalar_lea.sflag [#allocation4], %s1122
        %s1124 = sand.u32 %s297, 1
        %s1125 = smul.addr %s1124, 8
        %s1126 = scalar_lea.vmem [#allocation13], %s1125
        // Predicated region
        $region93: #{tpu_custom_call.1} parent=67 // pred_check
          %p1127 = pneg %p307
        $region94: #{tpu_custom_call.1} parent=67 // pred_check_branch
          %1129 = sbr.rel (%p1127) target = $region96
        $region95: #{tpu_custom_call.1} parent=67 // pred_region
          %s1131 = ssub.s32 128, 128
          %1132 = vsyncadd %s1123, %s1131
          %s1133 = smul.addr %s32, 128
          %s1134 = scalar_lea.hbm %s12, %s1133
          %s1136 = sshll.u32 %s1126, 4
          %s1137 = int_to_ptr.vmem [resolvable:$true] %s1136
          %1139 = dma.vmem_to_hbm [thread:$0]  %s1137, 128, %s1134, %s1123
        $region96: #{tpu_custom_call.1} parent=67 // pred_fallthru
          _
      $region68: #{tpu_custom_call.1} parent=5 // pred_fallthru
        _
      %p1140 = scmp.le.s32.totalorder 2, %s27
      // Predicated region
      $region97: #{tpu_custom_call.1} parent=5 // pred_check
        %p1141 = pneg %p1140
      $region98: #{tpu_custom_call.1} parent=5 // pred_check_branch
        %1143 = sbr.rel (%p1141) target = $region100
      $region99: #{tpu_custom_call.1} parent=5 // pred_region
        %s1144 = ssub.s32 %s27, 2
        // Predicated region
        $region101: #{tpu_custom_call.1} parent=99 // pred_check
          %p1145 = pneg %p313
        $region102: #{tpu_custom_call.1} parent=99 // pred_check_branch
          %1147 = sbr.rel (%p1145) target = $region104
        $region103: #{tpu_custom_call.1} parent=99 // pred_region
          %s1148 = sand.u32 %s298, 1
          %s1149 = scalar_lea.sflag [#allocation4], %s1148
          %s1150 = sand.u32 %s298, 1
          %s1151 = smul.addr %s1150, 8
          %s1152 = scalar_lea.vmem [#allocation13], %s1151
          %1153 = dma.done %s1149, 128
        $region104: #{tpu_custom_call.1} parent=99 // pred_fallthru
          _
      $region100: #{tpu_custom_call.1} parent=5 // pred_fallthru
        _
    $region6: #{tpu_custom_call.1} parent=1 // loop_footer
      %s31 = sadd.s32 1, %s27
    $region7: #{tpu_custom_call.1} parent=1 // loop_footer_branch
      %26 = sbr.rel target = $region3
    $region8: #{tpu_custom_call.1} parent=1 // loop_exit
      _
    %1154 = vsyncpa [#allocation3], 1
    %s1155 = scalar_lea.sflag [#allocation3], 1
    %1156 = vsyncpa %s1155, 1
    %1157 = vsyncpa [#allocation6], 1
    %1158 = vsyncpa [#allocation9], 1
    %1159 = vsyncpa [#allocation12], 1
    %1160 = vsyncpa [#allocation4], 1
    %s1161 = scalar_lea.sflag [#allocation4], 1
    %1162 = vsyncpa %s1161, 1

</llo_original>
